<compile_context>
chip_gen: v7x
topology: tpu7x:2x2x1
jax: 0.10.0
libtpu: 0.0.40
codegen_flags: <defaults>
</compile_context>

<pallas_src>
import functools

import jax
import jax.numpy as jnp
from jax.experimental import pallas as pl
from jax.experimental.pallas import tpu as pltpu


def _round_up(x, m):
    return ((x + m - 1) // m) * m


def _pick_tm(M, K, E_pad, in_itemsize, out_itemsize, budget_bytes=24 << 20):
    """Pick the M-tile size against a conservative VMEM budget."""
    # Resident: weight (K, E_pad) + bias; double-buffered: x tile + out tile.
    fixed = (K * E_pad + E_pad) * in_itemsize
    per_row = 2 * (K * in_itemsize + E_pad * out_itemsize)
    tm = (budget_bytes - fixed) // max(per_row, 1)
    tm = max(8, min(tm, 512, _round_up(M, 8)))
    return max(8, (tm // 8) * 8)


def _proj_kernel(x_ref, w_ref, b_ref, o_ref):
    # x_ref: (tm, K) patches, w_ref: (K, E_pad) resident, b_ref: (1, E_pad) f32,
    # o_ref: (tm, E_pad).  Accumulate in f32 on the MXU, add bias in f32.
    acc = jnp.dot(x_ref[...], w_ref[...], preferred_element_type=jnp.float32)
    o_ref[...] = (acc + b_ref[...]).astype(o_ref.dtype)


def conv_patch_embed(x, weight, bias, patch_size, flatten=True,
                     compute_dtype=None):
    """Forward pass of ConvPatchEmbed.

    x:      (B, C, H, W)   NCHW, same as PyTorch.
    weight: (E, C, ph, pw) nn.Conv2d weight layout.
    bias:   (E,)
    compute_dtype: optional matmul operand dtype (e.g. jnp.bfloat16 for the
                   v6e/v7x MXU fast path).  Accumulation stays f32.
    Returns (B, num_patches, E) if flatten else (B, E, gh, gw).
    """
    ph, pw = patch_size
    B, C, H, W = x.shape
    E = weight.shape[0]
    assert H % ph == 0 and W % pw == 0
    gh, gw = H // ph, W // pw
    n_patches = gh * gw

    # --- patch extraction (reshape/transpose glue; fused into the Pallas
    #     input DMA via allow_input_fusion below) ---
    # (B, C, gh, ph, gw, pw) -> (B, gh, gw, C, ph, pw) -> (B*N, C*ph*pw)
    patches = x.reshape(B, C, gh, ph, gw, pw).transpose(0, 2, 4, 1, 3, 5)
    patches = patches.reshape(B * n_patches, C * ph * pw)

    # Conv weight (E, C, ph, pw) -> matmul weight (C*ph*pw, E); flatten order
    # (C, ph, pw) matches the patch flattening order above.
    w_mat = weight.reshape(E, C * ph * pw).T

    if compute_dtype is not None:
        patches = patches.astype(compute_dtype)
        w_mat = w_mat.astype(compute_dtype)

    M, K = patches.shape

    # Lane-dense output: pad E up to a multiple of 128, slice afterwards.
    E_pad = _round_up(E, 128)
    w_mat = jnp.pad(w_mat, ((0, 0), (0, E_pad - E)))
    b_mat = jnp.pad(bias.astype(jnp.float32), (0, E_pad - E)).reshape(1, E_pad)

    in_itemsize = jnp.dtype(patches.dtype).itemsize
    out_itemsize = jnp.dtype(x.dtype).itemsize
    tm = _pick_tm(M, K, E_pad, in_itemsize, out_itemsize)
    grid_m = pl.cdiv(M, tm)

    cost = pl.CostEstimate(
        flops=2 * M * K * E_pad,
        transcendentals=0,
        bytes_accessed=(M * K + K * E_pad) * in_itemsize
        + M * E_pad * out_itemsize,
    )

    out = pl.pallas_call(
        _proj_kernel,
        out_shape=jax.ShapeDtypeStruct((M, E_pad), x.dtype),
        grid_spec=pl.GridSpec(
            grid=(grid_m,),
            in_specs=[
                # Streaming patch tile (double-buffered by the pipeline).
                pl.BlockSpec((tm, K), lambda i: (i, 0)),
                # Weight & bias: constant block index -> resident in VMEM.
                pl.BlockSpec((K, E_pad), lambda i: (0, 0)),
                pl.BlockSpec((1, E_pad), lambda i: (0, 0)),
            ],
            out_specs=pl.BlockSpec((tm, E_pad), lambda i: (i, 0)),
        ),
        compiler_params=pltpu.CompilerParams(
            dimension_semantics=("parallel",),
            vmem_limit_bytes=48 << 20,
            # Fuse the patch-extraction transpose into the input DMA
            # (removes a full HBM round trip for the patch matrix).
            allow_input_fusion=[True, False, False],
        ),
        cost_estimate=cost,
    )(patches, w_mat, b_mat)

    out = out[:, :E]

    if flatten:
        # Equivalent to PyTorch: proj(x).flatten(2).transpose(1, 2)
        return out.reshape(B, n_patches, E)
    # (B*N, E) -> (B, gh, gw, E) -> (B, E, gh, gw)
    return out.reshape(B, gh, gw, E).transpose(0, 3, 1, 2)


if __name__ == "__main__":
    # Small shapes consistent with the module:
    # img_size=16, patch_size=4, in_chans=4, embed_dim=32, batch=2
    B, C, H, W = 2, 4, 16, 16
    patch = (4, 4)
    E = 32

    key = jax.random.PRNGKey(0)
    kx, kw, kb = jax.random.split(key, 3)
    x = jax.random.normal(kx, (B, C, H, W), dtype=jnp.float32)
    weight = 0.02 * jax.random.normal(
        kw, (E, C, patch[0], patch[1]), dtype=jnp.float32)
    bias = 0.01 * jax.random.normal(kb, (E,), dtype=jnp.float32)

    fwd_f32 = jax.jit(functools.partial(
        conv_patch_embed, patch_size=patch, flatten=True))
    fwd_bf16 = jax.jit(functools.partial(
        conv_patch_embed, patch_size=patch, flatten=True,
        compute_dtype=jnp.bfloat16))

    out = jax.block_until_ready(fwd_f32(x, weight, bias))

    # Reference check in plain JAX (strided conv == patch matmul).
    ref = jax.lax.conv_general_dilated(
        x, weight, window_strides=patch, padding="VALID",
        dimension_numbers=("NCHW", "OIHW", "NCHW"),
    ) + bias.reshape(1, E, 1, 1)
    gh, gw = H // patch[0], W // patch[1]
    ref = ref.reshape(B, E, gh * gw).transpose(0, 2, 1)

    assert out.shape == (B, gh * gw, E)
    assert jnp.allclose(out, ref, atol=1e-4, rtol=1e-4)

    # bf16 MXU fast path (v6e/v7x); looser tolerance for bf16 operands.
    out_bf16 = jax.block_until_ready(fwd_bf16(x, weight, bias))
    assert out_bf16.shape == (B, gh * gw, E)
    assert jnp.allclose(out_bf16, ref, atol=2e-2, rtol=2e-2)

    print("KERNEL_OK")
</pallas_src>

<mosaic_0001>
module attributes {stable_mosaic.version = 11 : i64} {
  func.func @_proj_kernel(%arg0: i32, %arg1: memref<32x64xf32, #tpu.memory_space<vmem>>, %arg2: memref<64x128xf32, #tpu.memory_space<vmem>>, %arg3: memref<1x128xf32, #tpu.memory_space<vmem>>, %arg4: memref<32x128xf32, #tpu.memory_space<vmem>>) attributes {dimension_semantics = [#tpu.dimension_semantics<parallel>], iteration_bounds = array<i64: 1>, scalar_prefetch = 0 : i64, scratch_operands = 0 : i64, tpu.core_type = #tpu.core_type<tc>, window_params = [{transform_indices = @transform_0, window_bounds = array<i64: 32, 64>}, {pipeline_mode = #tpu.pipeline_mode<synchronous>, transform_indices = @transform_1, window_bounds = array<i64: 64, 128>}, {pipeline_mode = #tpu.pipeline_mode<synchronous>, transform_indices = @transform_2, window_bounds = array<i64: 1, 128>}, {transform_indices = @transform_3, window_bounds = array<i64: 32, 128>}]} {
    %c0 = arith.constant 0 : index
    %c0_0 = arith.constant 0 : index
    %0 = vector.load %arg1[%c0, %c0_0] : memref<32x64xf32, #tpu.memory_space<vmem>>, vector<32x64xf32>
    %c0_1 = arith.constant 0 : index
    %c0_2 = arith.constant 0 : index
    %1 = vector.load %arg2[%c0_1, %c0_2] : memref<64x128xf32, #tpu.memory_space<vmem>>, vector<64x128xf32>
    %cst = arith.constant dense<0.000000e+00> : vector<32x128xf32>
    %2 = tpu.matmul %0, %1, %cst {dimension_numbers = #tpu.dot_dimension_numbers<[1], [0], [0], [1], [0, 0, 1, 1], [], []>} : vector<32x64xf32>, vector<64x128xf32>, vector<32x128xf32> -> vector<32x128xf32>
    %c0_3 = arith.constant 0 : index
    %c0_4 = arith.constant 0 : index
    %3 = vector.load %arg3[%c0_3, %c0_4] : memref<1x128xf32, #tpu.memory_space<vmem>>, vector<1x128xf32>
    %4 = vector.broadcast %3 : vector<1x128xf32> to vector<32x128xf32>
    %5 = arith.addf %2, %4 : vector<32x128xf32>
    %c0_5 = arith.constant 0 : index
    %c0_6 = arith.constant 0 : index
    %6 = vector.load %arg4[%c0_5, %c0_6] : memref<32x128xf32, #tpu.memory_space<vmem>>, vector<32x128xf32>
    tpu.vector_store %arg4[%c0_5, %c0_6], %5 {strides = array<i32>} : memref<32x128xf32, #tpu.memory_space<vmem>>, vector<32x128xf32>,
    return
  }
  func.func @transform_0(%arg0: i32) -> (i32, i32) {
    %c0_i32 = arith.constant 0 : i32
    %c0_i32_0 = arith.constant 0 : i32
    return %arg0, %c0_i32 : i32, i32
  }
  func.func @transform_1(%arg0: i32) -> (i32, i32) {
    %c0_i32 = arith.constant 0 : i32
    %c0_i32_0 = arith.constant 0 : i32
    %c0_i32_1 = arith.constant 0 : i32
    return %c0_i32, %c0_i32_0 : i32, i32
  }
  func.func @transform_2(%arg0: i32) -> (i32, i32) {
    %c0_i32 = arith.constant 0 : i32
    %c0_i32_0 = arith.constant 0 : i32
    %c0_i32_1 = arith.constant 0 : i32
    return %c0_i32, %c0_i32_0 : i32, i32
  }
  func.func @transform_3(%arg0: i32) -> (i32, i32) {
    %c0_i32 = arith.constant 0 : i32
    %c0_i32_0 = arith.constant 0 : i32
    return %arg0, %c0_i32 : i32, i32
  }
}

</mosaic_0001>

<llo_original>
// kernel: conv_patch_embed.1
$region0: #{conv_patch_embed.1}
  #allocation0 [shape = 'u32[]', space=smem, size = 0x4, offset = 0x4, fixed_abs, tag = 'smem constant byte address 0x4 - core index']
  #allocation1 [shape = 'u32[144,128]{1,0:T(1,128)}', space=vmem, size = 0x12000, scoped, tag = 'internal scratch']
  %s0 = inlined_call_operand.vmem [shape: f32[32,64], index: 0, kind: input, shape index: {}]
  %s1 = inlined_call_operand.vmem [shape: f32[64,128], index: 1, kind: input, shape index: {}]
  %s2 = inlined_call_operand.vmem [shape: f32[1,128], index: 2, kind: input, shape index: {}]
  %s3 = inlined_call_operand.hbm [shape: f32[32,128], index: 3, kind: output, shape index: {}]
  %s4 = sld [smem:[#allocation0]]
  $region22: #{conv_patch_embed.1} parent=0
    _
  %s6 = ssub.s32 1, %s4
  %s7 = scalar_select 0, %s6, %s4
  $region1: #{conv_patch_embed.1} parent=0
    #allocation2 [shape = 'u8[16384]{0}', space=vmem, size = 0x4000, scoped, tag = 'output window, operand 0, single buffered']
    #allocation3 [shape = 's32[1]{0}', space=sflag, size = 0x4, scoped, tag = 'scoped memory for conv_patch_embed.1']
    %8 = vsyncpa [#allocation3], 0
    // Predicated region
    $region2: #{conv_patch_embed.1} parent=1 // pred_check
      _
    $region3: #{conv_patch_embed.1} parent=1 // pred_check_branch
      %10 = sbr.rel (0) target = $region5
    $region4: #{conv_patch_embed.1} parent=1 // pred_region
      _
    $region5: #{conv_patch_embed.1} parent=1 // pred_fallthru
      _
    // Predicated region
    $region6: #{conv_patch_embed.1} parent=1 // pred_check
      _
    $region7: #{conv_patch_embed.1} parent=1 // pred_check_branch
      %12 = sbr.rel (0) target = $region9
    $region8: #{conv_patch_embed.1} parent=1 // pred_region
      _
    $region9: #{conv_patch_embed.1} parent=1 // pred_fallthru
      _
    // Predicated region
    $region10: #{conv_patch_embed.1} parent=1 // pred_check
      _
    $region11: #{conv_patch_embed.1} parent=1 // pred_check_branch
      %14 = sbr.rel (0) target = $region13
    $region12: #{conv_patch_embed.1} parent=1 // pred_region
      _
    $region13: #{conv_patch_embed.1} parent=1 // pred_fallthru
      _
    %v15 = vld [vmem:[%s0] sm:$0xff]
    %v16 = vld [vmem:[%s0 + $0x8] sm:$0xff]
    %v17 = vld [vmem:[%s0 + $0x10] sm:$0xff]
    %v18 = vld [vmem:[%s0 + $0x18] sm:$0xff]
    %v19 = vld [vmem:[%s1] sm:$0xff]
    %v20 = vld [vmem:[%s1 + $0x8] sm:$0xff]
    %v21 = vld [vmem:[%s1 + $0x10] sm:$0xff]
    %v22 = vld [vmem:[%s1 + $0x18] sm:$0xff]
    %v23 = vld [vmem:[%s1 + $0x20] sm:$0xff]
    %v24 = vld [vmem:[%s1 + $0x28] sm:$0xff]
    %v25 = vld [vmem:[%s1 + $0x30] sm:$0xff]
    %v26 = vld [vmem:[%s1 + $0x38] sm:$0xff]
    %v27 = vld [vmem:[%s2] sm:$0x1]
    %v29 = vlaneseq
    %v30 = vshrl.u32 %v29, 7
    %v31 = vsub.s32 0, %v30
    %v32 = vrot.slane %v27, %v31
    %vm34 = vcmask 523264
    %v36 = vsel %vm34, %v15, 0
    %v39 = vsel %vm34, %v16, 0
    %v42 = vsel %vm34, %v17, 0
    %v45 = vsel %vm34, %v18, 0
    %47 = vmatprep.subr.mxu0 0.0
    %48 = vmatpush1.msra.mxu0 %v19
    %49 = vmatprep.subr.mxu0 0.0
    %50 = vmatpush1.msra.mxu0 %v20
    %51 = vmatprep.subr.mxu0 0.0
    %52 = vmatpush1.msra.mxu0 %v21
    %53 = vmatprep.subr.mxu0 0.0
    %54 = vmatpush1.msra.mxu0 %v22
    %55 = vmatprep.subr.mxu0 0.0
    %56 = vmatpush1.msra.mxu0 %v23
    %57 = vmatprep.subr.mxu0 0.0
    %58 = vmatpush1.msra.mxu0 %v24
    %59 = vmatprep.subr.mxu0 0.0
    %60 = vmatpush1.msra.mxu0 %v25
    %61 = vmatprep.subr.mxu0 0.0
    %62 = vmatpush1.msra.mxu0 %v26
    %63 = vmatprep.subr.mxu0 0.0
    %64 = vmatpush1.msra.mxu0 0.0
    %65 = vmatprep.subr.mxu0 0.0
    %66 = vmatpush1.msra.mxu0 0.0
    %67 = vmatprep.subr.mxu0 0.0
    %68 = vmatpush1.msra.mxu0 0.0
    %69 = vmatprep.subr.mxu0 0.0
    %70 = vmatpush1.msra.mxu0 0.0
    %71 = vmatprep.subr.mxu0 0.0
    %72 = vmatpush1.msra.mxu0 0.0
    %73 = vmatprep.subr.mxu0 0.0
    %74 = vmatpush1.msra.mxu0 0.0
    %75 = vmatprep.subr.mxu0 0.0
    %76 = vmatpush1.msra.mxu0 0.0
    %77 = vmatprep.subr.mxu0 0.0
    %78 = vmatpush1.msra.mxu0 0.0
    %79 = vmatprep.subr.mxu0 0.0
    %80 = vmatpush1.msra.mxu0 0.0
    %81 = vmatprep.subr.mxu0 0.0
    %82 = vmatpush1.msra.mxu0 0.0
    %83 = vmatprep.subr.mxu0 0.0
    %84 = vmatpush1.msra.mxu0 0.0
    %85 = vmatprep.subr.mxu0 0.0
    %86 = vmatpush1.msra.mxu0 0.0
    %87 = vmatprep.subr.mxu0 0.0
    %88 = vmatpush1.msra.mxu0 0.0
    %89 = vmatprep.subr.mxu0 0.0
    %90 = vmatpush1.msra.mxu0 0.0
    %91 = vmatprep.subr.mxu0 0.0
    %92 = vmatpush1.msra.mxu0 0.0
    %93 = vmatprep.subr.mxu0 0.0
    %94 = vmatpush1.msra.mxu0 0.0
    %95 = vmatprep.subr.mxu0 0.0
    %96 = vmatpush1.msra.mxu0 0.0
    %97 = vmatprep.subr.mxu0 0.0
    %98 = vmatpush1.msra.mxu0 0.0
    %99 = vmatprep.subr.mxu0 0.0
    %100 = vmatpush1.msra.mxu0 0.0
    %101 = vmatprep.subr.mxu0 0.0
    %102 = vmatpush1.msra.mxu0 0.0
    %103 = vmatprep.subr.mxu0 0.0
    %104 = vmatpush1.msra.mxu0 0.0
    %105 = vmatprep.subr.mxu0 0.0
    %106 = vmatpush1.msra.mxu0 0.0
    %107 = vmatprep.subr.mxu0 0.0
    %108 = vmatpush1.msra.mxu0 0.0
    %109 = vmatprep.subr.mxu0 0.0
    %110 = vmatpush1.msra.mxu0 0.0
    %111 = vmatprep.mubr.f32.mxu0 0.0
    %112 = vmatmul.mubr.f32.gmra.mrb[0].mxu0 %v36
    %v113 = vpop.f32.mrb[0].mxu0
    %v114 = vadd.f32 %v32, %v113
    %v115 = vpop.f32.mrb[0].mxu0
    %116 = vmatprep.mubr.f32.mxu0 0.0
    %117 = vmatmul.mubr.f32.gmra.mrb[0].mxu0 %v39
    %v118 = vpop.f32.mrb[0].mxu0
    %v119 = vadd.f32 %v32, %v118
    %v120 = vpop.f32.mrb[0].mxu0
    %121 = vmatprep.mubr.f32.mxu0 0.0
    %122 = vmatmul.mubr.f32.gmra.mrb[0].mxu0 %v42
    %v123 = vpop.f32.mrb[0].mxu0
    %v124 = vadd.f32 %v32, %v123
    %v125 = vpop.f32.mrb[0].mxu0
    %126 = vmatprep.mubr.f32.mxu0 0.0
    %127 = vmatmul.mubr.f32.gmra.mrb[0].mxu0 %v45
    %v128 = vpop.f32.mrb[0].mxu0
    %v129 = vadd.f32 %v32, %v128
    %v130 = vpop.f32.mrb[0].mxu0
    %131 = vdwg.mxu0
    %132 = vst [vmem:[#allocation2] sm:$0xff] %v114
    %133 = vst [vmem:[#allocation2 + $0x8] sm:$0xff] %v119
    %134 = vst [vmem:[#allocation2 + $0x10] sm:$0xff] %v124
    %135 = vst [vmem:[#allocation2 + $0x18] sm:$0xff] %v129
    // Predicated region
    $region14: #{conv_patch_embed.1} parent=1 // pred_check
      _
    $region15: #{conv_patch_embed.1} parent=1 // pred_check_branch
      %137 = sbr.rel (0) target = $region17
    $region16: #{conv_patch_embed.1} parent=1 // pred_region
      %s139 = ssub.s32 512, 512
      %140 = vsyncadd [#allocation3], %s139
      %s141 = sshll.u32 [#allocation2], 4
      %s142 = int_to_ptr.vmem [resolvable:$true] %s141
      %147 = dma.vmem_to_hbm [thread:$0]  %s142, 512, %s3, [#allocation3], 128, 128, 8
    $region17: #{conv_patch_embed.1} parent=1 // pred_fallthru
      _
    // Predicated region
    $region18: #{conv_patch_embed.1} parent=1 // pred_check
      _
    $region19: #{conv_patch_embed.1} parent=1 // pred_check_branch
      %149 = sbr.rel (0) target = $region21
    $region20: #{conv_patch_embed.1} parent=1 // pred_region
      %150 = dma.done [#allocation3], 512
    $region21: #{conv_patch_embed.1} parent=1 // pred_fallthru
      _
    %151 = vsyncpa [#allocation3], 1

</llo_original>
